<compile_context>
chip_gen: v7x
topology: tpu7x:2x2x1
jax: 0.10.0
libtpu: 0.0.40
codegen_flags: <defaults>
</compile_context>

<pallas_src>
import functools

import jax
import jax.numpy as jnp
import numpy as np
from jax import lax
from jax.experimental import pallas as pl
from jax.experimental.pallas import tpu as pltpu


def _st_kernel(src_ref, flow_ref, out_ref, *, C, A, B, TILE_P, contract_w):
    """One (batch, channel-tile, pixel-tile) grid step.

    src_ref : (1, C*A, B)     source rows grouped by channel; B = MXU axis
    flow_ref: (1, 2, TILE_P)  flow for this pixel tile (ch0 = dH, ch1 = dW)
    out_ref : (1, C, TILE_P)  flattened output tile
    """
    W = B if contract_w else A              # width of the original image

    src2d = src_ref[0]                                  # native dtype, no copy
    flow = flow_ref[0].astype(jnp.float32)              # (2, TILE_P)
    flow_y = flow[0:1, :]
    flow_x = flow[1:2, :]

    # ---- output-pixel coordinates via float math (no int div/mod) ----------
    p0 = pl.program_id(2) * TILE_P
    p = (p0 + lax.broadcasted_iota(jnp.int32, (1, TILE_P), 1)).astype(jnp.float32)
    inv_w = jnp.float32(1.0 / W)
    i_out = jnp.floor((p + 0.5) * inv_w)                # row   (exact, HW < ~4e6)
    j_out = p - i_out * jnp.float32(W)                  # col

    # align_corners=True: normalize/un-normalize round trip is the identity.
    iy = i_out + flow_y                                 # sample coord along H
    ix = j_out + flow_x                                 # sample coord along W

    if contract_w:
        k_coord, r_coord = ix, iy                       # MXU axis = W, VPU axis = H
    else:
        k_coord, r_coord = iy, ix                       # MXU axis = H, VPU axis = W

    # ---- bilinear "tent" operators; OOB samples -> 0 (zeros padding) -------
    k_idx = lax.broadcasted_iota(jnp.int32, (B, TILE_P), 0).astype(jnp.float32)
    r_idx = lax.broadcasted_iota(jnp.int32, (A, TILE_P), 0).astype(jnp.float32)
    opk = jnp.maximum(1.0 - jnp.abs(k_idx - k_coord), 0.0)     # (B, TILE_P)
    opr = jnp.maximum(1.0 - jnp.abs(r_idx - r_coord), 0.0)     # (A, TILE_P)

    # ---- stage 1: contract over B on the MXU (f32 accumulation) ------------
    if src2d.dtype != jnp.float32:
        opk = opk.astype(src2d.dtype)
    U = jnp.dot(src2d, opk, preferred_element_type=jnp.float32)  # (C*A, TILE_P)
    U3 = U.reshape(C, A, TILE_P)

    # ---- stage 2: contract over A on the VPU, chunked 8-row MAC ------------
    acc = jnp.zeros((C, TILE_P), jnp.float32)
    for a0 in range(0, A, 8):
        a1 = min(a0 + 8, A)
        acc = acc + jnp.sum(U3[:, a0:a1, :] * opr[None, a0:a1, :], axis=1)

    out_ref[0] = acc.astype(out_ref.dtype)


def _plan_tiles(HW, A, B, C, N, src_itemsize, out_itemsize):
    """Pick (channel_tile, pixel_tile) under a conservative scoped-VMEM budget.

    Budget accounts for the double-buffered, lane-padded src block, the
    flow/out blocks and the in-kernel f32 temporaries; 12 MiB fits the default
    scoped VMEM on v5e (16 MiB) and v6e/v7x (32 MiB) without extra flags.
    """
    def pad(x, m):
        return ((x + m - 1) // m) * m

    budget = 12 * 1024 * 1024

    def vmem_bytes(cb, tile):
        src_blk = pad(cb * A, 8) * pad(B, 128) * src_itemsize * 2      # 2 buffers
        flow_blk = 8 * pad(tile, 128) * 4 * 2
        out_blk = pad(cb, 8) * pad(tile, 128) * out_itemsize * 2
        # U (cb*A, tile) f32, operators, stage-2 chunk, accumulator, coords/slack.
        tmps = 4 * tile * (cb * A + pad(A, 8) + pad(B, 8) + 8 * cb + pad(cb, 8) + 64)
        return src_blk + flow_blk + out_blk + tmps

    # Lane-dense pixel-tile candidates: divisors of HW that are multiples of
    # 128; fall back to the full extent (legal, masked partial stores).
    p_cands = [d for d in range(128, HW + 1, 128) if HW % d == 0] or [HW]
    # Channel-tile candidates: full C, else divisors that are multiples of 8
    # (keeps the (8, 128) block-shape rule when the src / out blocks are sliced).
    c_cands = [C] + [c for c in range(C - 1, 0, -1) if C % c == 0 and c % 8 == 0]

    for cb in c_cands:                    # prefer full C: no operator recompute
        fitting = [t for t in p_cands if vmem_bytes(cb, t) <= budget]
        if not fitting:
            continue
        tile = max(fitting)
        if N * (C // cb) * (HW // tile) < 2:      # give both v7x TCs work
            two_plus = [t for t in fitting if HW // t >= 2]
            if two_plus:
                tile = max(two_plus)
        return cb, tile
    return c_cands[-1], min(p_cands)      # last resort (may exceed budget)


def spatial_transformer(src, flow):
    """src: (N, C, H, W), flow: (N, 2, H, W)  ->  (N, C, H, W)."""
    N, C, H, W = src.shape
    assert flow.shape == (N, 2, H, W)
    HW = H * W

    # MXU contraction axis = the larger spatial dim.
    contract_w = W >= H
    if contract_w:
        A, B = H, W
        src_r = src.reshape(N, C * H, W)                    # free metadata reshape
    else:
        A, B = W, H
        src_r = jnp.swapaxes(src, 2, 3).reshape(N, C * W, H)  # one-time transpose
    flow_r = flow.reshape(N, 2, HW)

    cb, tile = _plan_tiles(HW, A, B, C, N, src.dtype.itemsize, src.dtype.itemsize)
    assert C % cb == 0 and HW % tile == 0
    n_ct = C // cb
    n_pt = HW // tile

    kernel = functools.partial(
        _st_kernel, C=cb, A=A, B=B, TILE_P=tile, contract_w=contract_w)

    out = pl.pallas_call(
        kernel,
        out_shape=jax.ShapeDtypeStruct((N, C, HW), src.dtype),
        grid=(N, n_ct, n_pt),
        in_specs=[
            pl.BlockSpec((1, cb * A, B), lambda n, c, t: (n, c, 0)),
            pl.BlockSpec((1, 2, tile), lambda n, c, t: (n, 0, t)),
        ],
        out_specs=pl.BlockSpec((1, cb, tile), lambda n, c, t: (n, c, t)),
        compiler_params=pltpu.CompilerParams(
            dimension_semantics=("parallel", "parallel", "parallel")),
    )(src_r, flow_r)
    return out.reshape(N, C, H, W)


def _reference_forward(src, flow):
    """Numpy reference of the torch forward (bilinear, zeros padding,
    align_corners=True), including the normalize/un-normalize round trip."""
    src = np.asarray(src, np.float32)
    flow = np.asarray(flow, np.float32)
    N, C, H, W = src.shape
    ii = np.arange(H, dtype=np.float32)[None, :, None]
    jj = np.arange(W, dtype=np.float32)[None, None, :]
    gy = ii + flow[:, 0]
    gx = jj + flow[:, 1]
    ny = 2.0 * (gy / (H - 1) - 0.5)
    nx = 2.0 * (gx / (W - 1) - 0.5)
    iy = (ny + 1.0) * 0.5 * (H - 1)
    ix = (nx + 1.0) * 0.5 * (W - 1)
    y0 = np.floor(iy)
    x0 = np.floor(ix)
    wy1 = iy - y0
    wy0 = 1.0 - wy1
    wx1 = ix - x0
    wx0 = 1.0 - wx1
    out = np.zeros_like(src)
    corners = [(y0, x0, wy0, wx0), (y0, x0 + 1, wy0, wx1),
               (y0 + 1, x0, wy1, wx0), (y0 + 1, x0 + 1, wy1, wx1)]
    for yc, xc, wy, wx in corners:
        yi = yc.astype(np.int64)
        xi = xc.astype(np.int64)
        valid = (yi >= 0) & (yi < H) & (xi >= 0) & (xi < W)
        yic = np.clip(yi, 0, H - 1)
        xic = np.clip(xi, 0, W - 1)
        for n in range(N):
            vals = src[n][:, yic[n], xic[n]]             # (C, H, W)
            out[n] += vals * (wy[n] * wx[n] * valid[n])[None]
    return out


if __name__ == "__main__":
    key = jax.random.PRNGKey(0)

    def run_case(N, C, H, W, case_key):
        k_src, k_flow = jax.random.split(case_key)
        src = jax.random.normal(k_src, (N, C, H, W), dtype=jnp.float32)
        # displacement field of a few pixels; some samples land out of bounds
        flow = 2.0 * jax.random.normal(k_flow, (N, 2, H, W), dtype=jnp.float32)

        out = jax.block_until_ready(spatial_transformer(src, flow))
        ref = _reference_forward(np.asarray(src), np.asarray(flow))
        assert out.shape == (N, C, H, W)
        assert np.allclose(np.asarray(out), ref, rtol=1e-4, atol=1e-4), (
            f"kernel does not match reference for shape {(N, C, H, W)}")

    k1, k2, k3 = jax.random.split(key, 3)
    run_case(2, 4, 16, 16, k1)    # W == H, one 256-lane tile per batch
    run_case(1, 3, 8, 48, k2)     # W > H, HW=384 -> three 128-lane tiles (N=1)
    run_case(1, 2, 32, 8, k3)     # H > W: contraction over H (transposed path)

    print("KERNEL_OK")
</pallas_src>

<mosaic_0001>
module attributes {stable_mosaic.version = 11 : i64} {
  func.func @_st_kernel(%arg0: i32, %arg1: i32, %arg2: i32, %arg3: memref<1x64x16xf32, #tpu.memory_space<vmem>>, %arg4: memref<1x2x256xf32, #tpu.memory_space<vmem>>, %arg5: memref<1x4x256xf32, #tpu.memory_space<vmem>>) attributes {dimension_semantics = [#tpu.dimension_semantics<parallel>, #tpu.dimension_semantics<parallel>, #tpu.dimension_semantics<parallel>], iteration_bounds = array<i64: 2, 1, 1>, scalar_prefetch = 0 : i64, scratch_operands = 0 : i64, tpu.core_type = #tpu.core_type<tc>, window_params = [{transform_indices = @transform_0, window_bounds = array<i64: 1, 64, 16>}, {transform_indices = @transform_1, window_bounds = array<i64: 1, 2, 256>}, {transform_indices = @transform_2, window_bounds = array<i64: 1, 4, 256>}]} {
    %c0 = arith.constant 0 : index
    %c0_0 = arith.constant 0 : index
    %c0_1 = arith.constant 0 : index
    %0 = vector.load %arg3[%c0, %c0_0, %c0_1] : memref<1x64x16xf32, #tpu.memory_space<vmem>>, vector<1x64x16xf32>
    %1 = vector.shape_cast %0 : vector<1x64x16xf32> to vector<64x16xf32>
    %c0_2 = arith.constant 0 : index
    %c0_3 = arith.constant 0 : index
    %c0_4 = arith.constant 0 : index
    %2 = vector.load %arg4[%c0_2, %c0_3, %c0_4] : memref<1x2x256xf32, #tpu.memory_space<vmem>>, vector<1x2x256xf32>
    %3 = vector.shape_cast %2 : vector<1x2x256xf32> to vector<2x256xf32>
    %4 = vector.extract_strided_slice %3 {offsets = [0, 0], sizes = [1, 256], strides = [1, 1]} : vector<2x256xf32> to vector<1x256xf32>
    %5 = vector.extract_strided_slice %3 {offsets = [1, 0], sizes = [1, 256], strides = [1, 1]} : vector<2x256xf32> to vector<1x256xf32>
    %c256_i32 = arith.constant 256 : i32
    %6 = arith.muli %arg2, %c256_i32 : i32
    %7 = tpu.iota {dimensions = array<i32: 1>} : vector<1x256xi32>
    %8 = vector.broadcast %6 : i32 to vector<1x256xi32>
    %9 = arith.addi %8, %7 : vector<1x256xi32>
    %10 = arith.sitofp %9 : vector<1x256xi32> to vector<1x256xf32>
    %cst = arith.constant 5.000000e-01 : f32
    %11 = vector.broadcast %cst : f32 to vector<1x256xf32>
    %12 = arith.addf %10, %11 : vector<1x256xf32>
    %cst_5 = arith.constant 6.250000e-02 : f32
    %13 = vector.broadcast %cst_5 : f32 to vector<1x256xf32>
    %14 = arith.mulf %12, %13 : vector<1x256xf32>
    %15 = math.floor %14 : vector<1x256xf32>
    %cst_6 = arith.constant 1.600000e+01 : f32
    %16 = vector.broadcast %cst_6 : f32 to vector<1x256xf32>
    %17 = arith.mulf %15, %16 : vector<1x256xf32>
    %18 = arith.subf %10, %17 : vector<1x256xf32>
    %19 = arith.addf %15, %4 : vector<1x256xf32>
    %20 = arith.addf %18, %5 : vector<1x256xf32>
    %21 = tpu.iota {dimensions = array<i32: 0>} : vector<16x256xi32>
    %22 = arith.sitofp %21 : vector<16x256xi32> to vector<16x256xf32>
    %23 = tpu.iota {dimensions = array<i32: 0>} : vector<16x256xi32>
    %24 = arith.sitofp %23 : vector<16x256xi32> to vector<16x256xf32>
    %25 = vector.broadcast %20 : vector<1x256xf32> to vector<16x256xf32>
    %26 = arith.subf %22, %25 : vector<16x256xf32>
    %27 = math.absf %26 : vector<16x256xf32>
    %cst_7 = arith.constant 1.000000e+00 : f32
    %28 = vector.broadcast %cst_7 : f32 to vector<16x256xf32>
    %29 = arith.subf %28, %27 : vector<16x256xf32>
    %cst_8 = arith.constant 0.000000e+00 : f32
    %30 = vector.broadcast %cst_8 : f32 to vector<16x256xf32>
    %31 = arith.maximumf %29, %30 : vector<16x256xf32>
    %32 = vector.broadcast %19 : vector<1x256xf32> to vector<16x256xf32>
    %33 = arith.subf %24, %32 : vector<16x256xf32>
    %34 = math.absf %33 : vector<16x256xf32>
    %cst_9 = arith.constant 1.000000e+00 : f32
    %35 = vector.broadcast %cst_9 : f32 to vector<16x256xf32>
    %36 = arith.subf %35, %34 : vector<16x256xf32>
    %cst_10 = arith.constant 0.000000e+00 : f32
    %37 = vector.broadcast %cst_10 : f32 to vector<16x256xf32>
    %38 = arith.maximumf %36, %37 : vector<16x256xf32>
    %cst_11 = arith.constant dense<0.000000e+00> : vector<64x256xf32>
    %39 = tpu.matmul %1, %31, %cst_11 {dimension_numbers = #tpu.dot_dimension_numbers<[1], [0], [0], [1], [0, 0, 1, 1], [], []>} : vector<64x16xf32>, vector<16x256xf32>, vector<64x256xf32> -> vector<64x256xf32>
    %40 = vector.shape_cast %39 : vector<64x256xf32> to vector<4x16x256xf32>
    %cst_12 = arith.constant 0.000000e+00 : f32
    %41 = vector.broadcast %cst_12 : f32 to vector<4x256xf32>
    %42 = vector.extract_strided_slice %40 {offsets = [0, 0, 0], sizes = [4, 8, 256], strides = [1, 1, 1]} : vector<4x16x256xf32> to vector<4x8x256xf32>
    %43 = vector.extract_strided_slice %38 {offsets = [0, 0], sizes = [8, 256], strides = [1, 1]} : vector<16x256xf32> to vector<8x256xf32>
    %44 = vector.shape_cast %43 : vector<8x256xf32> to vector<1x8x256xf32>
    %45 = vector.broadcast %44 : vector<1x8x256xf32> to vector<4x8x256xf32>
    %46 = arith.mulf %42, %45 : vector<4x8x256xf32>
    %cst_13 = arith.constant dense<0.000000e+00> : vector<4x256xf32>
    %47 = vector.multi_reduction <add>, %46, %cst_13 [1] : vector<4x8x256xf32> to vector<4x256xf32>
    %48 = arith.addf %41, %47 : vector<4x256xf32>
    %49 = vector.extract_strided_slice %40 {offsets = [0, 8, 0], sizes = [4, 8, 256], strides = [1, 1, 1]} : vector<4x16x256xf32> to vector<4x8x256xf32>
    %50 = vector.extract_strided_slice %38 {offsets = [8, 0], sizes = [8, 256], strides = [1, 1]} : vector<16x256xf32> to vector<8x256xf32>
    %51 = vector.shape_cast %50 : vector<8x256xf32> to vector<1x8x256xf32>
    %52 = vector.broadcast %51 : vector<1x8x256xf32> to vector<4x8x256xf32>
    %53 = arith.mulf %49, %52 : vector<4x8x256xf32>
    %cst_14 = arith.constant dense<0.000000e+00> : vector<4x256xf32>
    %54 = vector.multi_reduction <add>, %53, %cst_14 [1] : vector<4x8x256xf32> to vector<4x256xf32>
    %55 = arith.addf %48, %54 : vector<4x256xf32>
    %c0_15 = arith.constant 0 : index
    %c0_16 = arith.constant 0 : index
    %c0_17 = arith.constant 0 : index
    %56 = vector.load %arg5[%c0_15, %c0_16, %c0_17] : memref<1x4x256xf32, #tpu.memory_space<vmem>>, vector<1x4x256xf32>
    %57 = vector.shape_cast %56 : vector<1x4x256xf32> to vector<4x256xf32>
    %58 = vector.shape_cast %55 : vector<4x256xf32> to vector<1x4x256xf32>
    tpu.vector_store %arg5[%c0_15, %c0_16, %c0_17], %58 {strides = array<i32>} : memref<1x4x256xf32, #tpu.memory_space<vmem>>, vector<1x4x256xf32>,
    return
  }
  func.func @transform_0(%arg0: i32, %arg1: i32, %arg2: i32) -> (i32, i32, i32) {
    %c0_i32 = arith.constant 0 : i32
    %c0_i32_0 = arith.constant 0 : i32
    return %arg0, %arg1, %c0_i32 : i32, i32, i32
  }
  func.func @transform_1(%arg0: i32, %arg1: i32, %arg2: i32) -> (i32, i32, i32) {
    %c0_i32 = arith.constant 0 : i32
    %c0_i32_0 = arith.constant 0 : i32
    return %arg0, %c0_i32, %arg2 : i32, i32, i32
  }
  func.func @transform_2(%arg0: i32, %arg1: i32, %arg2: i32) -> (i32, i32, i32) {
    %c0_i32 = arith.constant 0 : i32
    return %arg0, %arg1, %arg2 : i32, i32, i32
  }
}

</mosaic_0001>

<llo_original>
// kernel: tpu_custom_call.1
$region0: #{tpu_custom_call.1}
  #allocation0 [shape = 'u32[]', space=smem, size = 0x4, offset = 0x4, fixed_abs, tag = 'smem constant byte address 0x4 - core index']
  #allocation1 [shape = 'u32[144,128]{1,0:T(1,128)}', space=vmem, size = 0x12000, scoped, tag = 'internal scratch']
  %s0 = inlined_call_operand.vmem [shape: f32[2,64,16], index: 0, kind: input, shape index: {}]
  %s1 = inlined_call_operand.vmem [shape: f32[2,2,256], index: 1, kind: input, shape index: {}]
  %s2 = inlined_call_operand.hbm [shape: f32[2,4,256], index: 2, kind: output, shape index: {}]
  %s3 = sld [smem:[#allocation0]]
  $region41: #{tpu_custom_call.1} parent=0
    _
  %s5 = ssub.s32 1, %s3
  %s6 = scalar_select 0, %s5, %s3
  $region1: #{tpu_custom_call.1} parent=0
    #allocation2 [shape = 'u8[8192]{0}', space=vmem, size = 0x2000, scoped, tag = 'output window, operand 0']
    #allocation3 [shape = 's32[2]{0}', space=sflag, size = 0x8, scoped, tag = 'scoped memory for tpu_custom_call.1']
    %7 = vsyncpa [#allocation3], 0
    %s8 = scalar_lea.sflag [#allocation3], 1
    %9 = vsyncpa %s8, 0
    loop: start=0, step=1, limit=4
    $region2: #{tpu_custom_call.1} parent=1 // loop_pre_header
      _
    $region3: #{tpu_custom_call.1} parent=1 // loop_header
      %s11 = sphi 0, %s15
      %p12 = scmp.ge.s32.totalorder %s11, 4
      %s18 = sphi 0, %s37
      %s19 = sphi 0, %s33
      %s20 = sphi 0, %s29
      %s21 = sphi 0, %s18
      %s22 = sphi 0, %s19
      %s23 = sphi 0, %s20
      %s24 = sphi 0, %s21
      %s25 = sphi 0, %s22
      %s26 = sphi 0, %s23
      %s42 = sphi 0, %s44
      %s45 = sphi 0, %s42
      %s46 = sphi 0, %s45
      %s62 = sphi 0, %s46
      %s70 = sphi 0, %s72
      %s73 = sphi 0, %s70
      %s74 = sphi 0, %s73
      %s90 = sphi 0, %s74
      %s100 = sphi 0, %s102
      %s103 = sphi 0, %s100
      %s104 = sphi 0, %s103
      %s120 = sphi 0, %s104
    $region4: #{tpu_custom_call.1} parent=1 // loop_header_branch
      %14 = sbr.rel (%p12) target = $region8
    $region5: #{tpu_custom_call.1} parent=1 // loop_body
      %s16 = ssub.s32 %s11, 1
      %s17 = ssub.s32 %s11, 2
      %s27 = sadd.s32 1, %s20
      %p28 = scmp.ge.s32.totalorder %s27, 1
      %s29 = scalar_select %p28, 0, %s27
      %s30 = sadd.s32 1, %s19
      %s31 = scalar_select %p28, %s30, %s19
      %p32 = scmp.ge.s32.totalorder %s31, 1
      %s33 = scalar_select %p32, 0, %s31
      %s34 = sadd.s32 1, %s18
      %s35 = scalar_select %p32, %s34, %s18
      %p36 = scmp.ge.s32.totalorder %s35, 2
      %s37 = scalar_select %p36, 0, %s35
      %s38 = ssub.s32 %s18, %s37
      %s39 = ssub.s32 %s19, %s33
      %s40 = sor.u32 %s38, %s39
      %p41 = scmp.eq.s32.totalorder %s40, 0
      %s43 = sadd.s32 %s42, 1
      %s44 = scalar_select %p41, %s42, %s43
      %p47 = pneg %p41
      %p48 = scmp.eq.s32.totalorder %s11, 1
      %p49 = por %p47, %p48
      %p50 = scmp.ne.s32.totalorder %s42, %s45
      %p51 = scmp.eq.s32.totalorder %s11, 0
      %p52 = por %p50, %p51
      %p53 = scmp.ne.s32.totalorder %s42, %s45
      %p54 = scmp.eq.s32.totalorder %s16, 1
      %p55 = por %p53, %p54
      %p56 = scmp.ne.s32.totalorder %s45, %s46
      %p57 = scmp.eq.s32.totalorder %s16, 0
      %p58 = por %p56, %p57
      %p59 = scmp.ne.s32.totalorder %s45, %s46
      %p60 = scmp.eq.s32.totalorder %s17, 1
      %p61 = por %p59, %p60
      %p63 = scmp.ne.s32.totalorder %s46, %s62
      %p64 = scmp.eq.s32.totalorder %s17, 0
      %p65 = por %p63, %p64
      %s66 = ssub.s32 %s18, %s37
      %s67 = ssub.s32 %s20, %s29
      %s68 = sor.u32 %s66, %s67
      %p69 = scmp.eq.s32.totalorder %s68, 0
      %s71 = sadd.s32 %s70, 1
      %s72 = scalar_select %p69, %s70, %s71
      %p75 = pneg %p69
      %p76 = scmp.eq.s32.totalorder %s11, 1
      %p77 = por %p75, %p76
      %p78 = scmp.ne.s32.totalorder %s70, %s73
      %p79 = scmp.eq.s32.totalorder %s11, 0
      %p80 = por %p78, %p79
      %p81 = scmp.ne.s32.totalorder %s70, %s73
      %p82 = scmp.eq.s32.totalorder %s16, 1
      %p83 = por %p81, %p82
      %p84 = scmp.ne.s32.totalorder %s73, %s74
      %p85 = scmp.eq.s32.totalorder %s16, 0
      %p86 = por %p84, %p85
      %p87 = scmp.ne.s32.totalorder %s73, %s74
      %p88 = scmp.eq.s32.totalorder %s17, 1
      %p89 = por %p87, %p88
      %p91 = scmp.ne.s32.totalorder %s74, %s90
      %p92 = scmp.eq.s32.totalorder %s17, 0
      %p93 = por %p91, %p92
      %s94 = ssub.s32 %s18, %s37
      %s95 = ssub.s32 %s19, %s33
      %s96 = sor.u32 %s94, %s95
      %s97 = ssub.s32 %s20, %s29
      %s98 = sor.u32 %s96, %s97
      %p99 = scmp.eq.s32.totalorder %s98, 0
      %s101 = sadd.s32 %s100, 1
      %s102 = scalar_select %p99, %s100, %s101
      %p105 = pneg %p99
      %p106 = scmp.eq.s32.totalorder %s11, 1
      %p107 = por %p105, %p106
      %p108 = scmp.ne.s32.totalorder %s100, %s103
      %p109 = scmp.eq.s32.totalorder %s11, 0
      %p110 = por %p108, %p109
      %p111 = scmp.ne.s32.totalorder %s100, %s103
      %p112 = scmp.eq.s32.totalorder %s16, 1
      %p113 = por %p111, %p112
      %p114 = scmp.ne.s32.totalorder %s103, %s104
      %p115 = scmp.eq.s32.totalorder %s16, 0
      %p116 = por %p114, %p115
      %p117 = scmp.ne.s32.totalorder %s103, %s104
      %p118 = scmp.eq.s32.totalorder %s17, 1
      %p119 = por %p117, %p118
      %p121 = scmp.ne.s32.totalorder %s104, %s120
      %p122 = scmp.eq.s32.totalorder %s17, 0
      %p123 = por %p121, %p122
      %p124 = scmp.le.s32.totalorder 1, %s11
      %p125 = scmp.lt.s32.totalorder %s11, 3
      %p126 = pnand %p124, %p125
      %p127 = pneg %p126
      // Predicated region
      $region9: #{tpu_custom_call.1} parent=5 // pred_check
        _
      $region10: #{tpu_custom_call.1} parent=5 // pred_check_branch
        %129 = sbr.rel (%p126) target = $region12
      $region11: #{tpu_custom_call.1} parent=5 // pred_region
        %s130 = ssub.s32 %s11, 1
      $region12: #{tpu_custom_call.1} parent=5 // pred_fallthru
        _
      %p131 = scmp.lt.s32.totalorder %s11, 2
      // Predicated region
      $region13: #{tpu_custom_call.1} parent=5 // pred_check
        %p132 = pneg %p131
      $region14: #{tpu_custom_call.1} parent=5 // pred_check_branch
        %134 = sbr.rel (%p132) target = $region16
      $region15: #{tpu_custom_call.1} parent=5 // pred_region
        // Predicated region
        $region17: #{tpu_custom_call.1} parent=15 // pred_check
          %p135 = pneg %p52
        $region18: #{tpu_custom_call.1} parent=15 // pred_check_branch
          %137 = sbr.rel (%p135) target = $region20
        $region19: #{tpu_custom_call.1} parent=15 // pred_region
          %s138 = smul.u32 8, %s19
          %p139 = scmp.lt.s32.totalorder %s18, 1
          %s140 = scalar_select %p139, %s18, 1
          %p141 = scmp.lt.s32.totalorder %s138, 7
          %s142 = scalar_select %p141, %s138, 7
          %s143 = smul.addr %s140, 8
          %s144 = sadd.s32 %s142, %s143
          %s145 = smul.addr %s144, 8
          %s146 = scalar_lea.vmem %s0, %s145
          %s147 = smul.u32 8, %s19
        $region20: #{tpu_custom_call.1} parent=15 // pred_fallthru
          _
        // Predicated region
        $region21: #{tpu_custom_call.1} parent=15 // pred_check
          %p148 = pneg %p80
        $region22: #{tpu_custom_call.1} parent=15 // pred_check_branch
          %150 = sbr.rel (%p148) target = $region24
        $region23: #{tpu_custom_call.1} parent=15 // pred_region
          %s151 = smul.u32 2, %s20
          %p152 = scmp.lt.s32.totalorder %s18, 1
          %s153 = scalar_select %p152, %s18, 1
          %p154 = scmp.lt.s32.totalorder %s151, 1
          %s155 = scalar_select %p154, %s151, 1
          %s156 = smul.addr %s153, 2
          %s157 = sadd.s32 %s155, %s156
          %s158 = smul.addr %s157, 2
          %s159 = scalar_lea.vmem %s1, %s158
          %s160 = smul.u32 2, %s20
        $region24: #{tpu_custom_call.1} parent=15 // pred_fallthru
          _
      $region16: #{tpu_custom_call.1} parent=5 // pred_fallthru
        _
      %p161 = scmp.le.s32.totalorder 1, %s11
      %p162 = scmp.lt.s32.totalorder %s11, 3
      %p163 = pnand %p161, %p162
      %p164 = pneg %p163
      // Predicated region
      $region25: #{tpu_custom_call.1} parent=5 // pred_check
        _
      $region26: #{tpu_custom_call.1} parent=5 // pred_check_branch
        %166 = sbr.rel (%p163) target = $region28
      $region27: #{tpu_custom_call.1} parent=5 // pred_region
        %s167 = ssub.s32 %s11, 1
        %s168 = smul.u32 8, %s22
        %p169 = scmp.lt.s32.totalorder %s21, 1
        %s170 = scalar_select %p169, %s21, 1
        %p171 = scmp.lt.s32.totalorder %s168, 7
        %s172 = scalar_select %p171, %s168, 7
        %s173 = smul.addr %s170, 8
        %s174 = sadd.s32 %s172, %s173
        %s175 = smul.addr %s174, 8
        %s176 = scalar_lea.vmem %s0, %s175
        %p177 = pneg %p58
        %p178 = pneg %p55
        %s179 = smul.u32 2, %s23
        %p180 = scmp.lt.s32.totalorder %s21, 1
        %s181 = scalar_select %p180, %s21, 1
        %p182 = scmp.lt.s32.totalorder %s179, 1
        %s183 = scalar_select %p182, %s179, 1
        %s184 = smul.addr %s181, 2
        %s185 = sadd.s32 %s183, %s184
        %s186 = smul.addr %s185, 2
        %s187 = scalar_lea.vmem %s1, %s186
        %p188 = pneg %p86
        %p189 = pneg %p83
        %p190 = pneg %p116
        %p191 = pneg %p113
        %s192 = sand.u32 %s103, 1
        %s193 = scalar_lea.sflag [#allocation3], %s192
        %s194 = sand.u32 %s103, 1
        %s195 = smul.addr %s194, 8
        %s196 = scalar_lea.vmem [#allocation2], %s195
        %s197 = smul.u32 8, %s22
        %p198 = scmp.lt.s32.totalorder %s21, 1
        %s199 = scalar_select %p198, %s21, 1
        %p200 = scmp.lt.s32.totalorder %s197, 7
        %s201 = scalar_select %p200, %s197, 7
        %s202 = smul.addr %s199, 8
        %s203 = sadd.s32 %s201, %s202
        %s204 = smul.addr %s203, 8
        %s205 = scalar_lea.vmem %s0, %s204
        %s206 = smul.u32 8, %s22
        %s207 = smul.u32 2, %s23
        %p208 = scmp.lt.s32.totalorder %s21, 1
        %s209 = scalar_select %p208, %s21, 1
        %p210 = scmp.lt.s32.totalorder %s207, 1
        %s211 = scalar_select %p210, %s207, 1
        %s212 = smul.addr %s209, 2
        %s213 = sadd.s32 %s211, %s212
        %s214 = smul.addr %s213, 2
        %s215 = scalar_lea.vmem %s1, %s214
        %s216 = smul.u32 2, %s23
        %s217 = smul.u32 2, %s23
        %v218 = vld [vmem:[%s205] sm:$0xff]
        %v219 = vld [vmem:[%s205 + $0x8] sm:$0xff]
        %v220 = vld [vmem:[%s205 + $0x10] sm:$0xff]
        %v221 = vld [vmem:[%s205 + $0x18] sm:$0xff]
        %v222 = vld [vmem:[%s205 + $0x20] sm:$0xff]
        %v223 = vld [vmem:[%s205 + $0x28] sm:$0xff]
        %v224 = vld [vmem:[%s205 + $0x30] sm:$0xff]
        %v225 = vld [vmem:[%s205 + $0x38] sm:$0xff]
        %v226 = vld [vmem:[%s215] sm:$0xf]
        %s227 = smul.u32 %s23, 256
        %v228 = vlaneseq
        %v229 = vand.u32 %v228, 127
        %v230 = vadd.s32 %v229, 128
        %v231 = vstv %s227
        %v232 = vadd.s32 %v231, %v229
        %v233 = vadd.s32 %v231, %v230
        %v234 = vcvt.s32.f32 %v232
        %v235 = vcvt.s32.f32 %v233
        %v236 = vadd.f32 %v234, 0.5
        %v237 = vadd.f32 %v235, 0.5
        %v238 = vmul.f32 %v236, 0.0625
        %v239 = vmul.f32 %v237, 0.0625
        %v240 = vfloor.f32 %v238
        %v241 = vfloor.f32 %v239
        %v242 = vmul.f32 %v240, 16.0
        %v243 = vmul.f32 %v241, 16.0
        %v244 = vsub.f32 %v234, %v242
        %v245 = vsub.f32 %v235, %v243
        %v247 = vlaneseq
        %v248 = vshrl.u32 %v247, 7
        %v249 = vsub.s32 0, %v248
        %v250 = vrot.slane %v226, %v249
        %v251 = vlaneseq
        %v252 = vshrl.u32 %v251, 7
        %v253 = vsub.s32 2, %v252
        %v254 = vrot.slane %v226, %v253
        %v257 = vadd.f32 %v240, %v250
        %v258 = vadd.f32 %v241, %v254
        %v259 = vlaneseq
        %v260 = vshrl.u32 %v259, 7
        %v261 = vsub.s32 1, %v260
        %v262 = vrot.slane %v226, %v261
        %v263 = vlaneseq
        %v264 = vshrl.u32 %v263, 7
        %v265 = vsub.s32 3, %v264
        %v266 = vrot.slane %v226, %v265
        %v269 = vadd.f32 %v244, %v262
        %v270 = vadd.f32 %v245, %v266
        %v271 = vlaneseq
        %v272 = vshrl.u32 %v271, 7
        %v273 = vadd.s32 %v272, 8
        %v274 = vcvt.s32.f32 %v272
        %v275 = vcvt.s32.f32 %v273
        %v276 = vlaneseq
        %v277 = vshrl.u32 %v276, 7
        %v278 = vsub.s32 0, %v277
        %v279 = vrot.slane %v269, %v278
        %v280 = vlaneseq
        %v281 = vshrl.u32 %v280, 7
        %v282 = vsub.s32 0, %v281
        %v283 = vrot.slane %v270, %v282
        %v284 = vsub.f32 %v274, %v279
        %v285 = vsub.f32 %v274, %v283
        %v286 = vsub.f32 %v275, %v279
        %v287 = vsub.f32 %v275, %v283
        %v288 = vand.u32 2147483647, %v284
        %v289 = vand.u32 2147483647, %v285
        %v290 = vand.u32 2147483647, %v286
        %v291 = vand.u32 2147483647, %v287
        %v292 = vsub.f32 1.0, %v288
        %v293 = vsub.f32 1.0, %v289
        %v294 = vsub.f32 1.0, %v290
        %v295 = vsub.f32 1.0, %v291
        %v296 = vmax.f32 %v292, 0.0
        %v297 = vmax.f32 %v293, 0.0
        %v298 = vmax.f32 %v294, 0.0
        %v299 = vmax.f32 %v295, 0.0
        %v300 = vlaneseq
        %v301 = vshrl.u32 %v300, 7
        %v302 = vsub.s32 0, %v301
        %v303 = vrot.slane %v257, %v302
        %v304 = vlaneseq
        %v305 = vshrl.u32 %v304, 7
        %v306 = vsub.s32 0, %v305
        %v307 = vrot.slane %v258, %v306
        %v308 = vsub.f32 %v274, %v303
        %v309 = vsub.f32 %v274, %v307
        %v310 = vsub.f32 %v275, %v303
        %v311 = vsub.f32 %v275, %v307
        %v312 = vand.u32 2147483647, %v308
        %v313 = vand.u32 2147483647, %v309
        %v314 = vand.u32 2147483647, %v310
        %v315 = vand.u32 2147483647, %v311
        %v316 = vsub.f32 1.0, %v312
        %v317 = vsub.f32 1.0, %v313
        %v318 = vsub.f32 1.0, %v314
        %v319 = vsub.f32 1.0, %v315
        %v320 = vmax.f32 %v316, 0.0
        %v321 = vmax.f32 %v317, 0.0
        %v322 = vmax.f32 %v318, 0.0
        %v323 = vmax.f32 %v319, 0.0
        %vm324 = vcmask 130048
        %v326 = vsel %vm324, %v218, 0
        %v329 = vsel %vm324, %v219, 0
        %v332 = vsel %vm324, %v220, 0
        %v335 = vsel %vm324, %v221, 0
        %v338 = vsel %vm324, %v222, 0
        %v341 = vsel %vm324, %v223, 0
        %v344 = vsel %vm324, %v224, 0
        %v347 = vsel %vm324, %v225, 0
        %349 = vmatprep.subr.mxu0 %v297
        %350 = vmatpush1.msra.mxu0 %v296
        %351 = vmatprep.subr.mxu0 %v299
        %352 = vmatpush1.msra.mxu0 %v298
        %353 = vmatprep.subr.mxu0 0.0
        %354 = vmatpush1.msra.mxu0 0.0
        %355 = vmatprep.subr.mxu0 0.0
        %356 = vmatpush1.msra.mxu0 0.0
        %357 = vmatprep.subr.mxu0 0.0
        %358 = vmatpush1.msra.mxu0 0.0
        %359 = vmatprep.subr.mxu0 0.0
        %360 = vmatpush1.msra.mxu0 0.0
        %361 = vmatprep.subr.mxu0 0.0
        %362 = vmatpush1.msra.mxu0 0.0
        %363 = vmatprep.subr.mxu0 0.0
        %364 = vmatpush1.msra.mxu0 0.0
        %365 = vmatprep.subr.mxu0 0.0
        %366 = vmatpush1.msra.mxu0 0.0
        %367 = vmatprep.subr.mxu0 0.0
        %368 = vmatpush1.msra.mxu0 0.0
        %369 = vmatprep.subr.mxu0 0.0
        %370 = vmatpush1.msra.mxu0 0.0
        %371 = vmatprep.subr.mxu0 0.0
        %372 = vmatpush1.msra.mxu0 0.0
        %373 = vmatprep.subr.mxu0 0.0
        %374 = vmatpush1.msra.mxu0 0.0
        %375 = vmatprep.subr.mxu0 0.0
        %376 = vmatpush1.msra.mxu0 0.0
        %377 = vmatprep.subr.mxu0 0.0
        %378 = vmatpush1.msra.mxu0 0.0
        %379 = vmatprep.subr.mxu0 0.0
        %380 = vmatpush1.msra.mxu0 0.0
        %381 = vmatprep.subr.mxu0 0.0
        %382 = vmatpush1.msra.mxu0 0.0
        %383 = vmatprep.subr.mxu0 0.0
        %384 = vmatpush1.msra.mxu0 0.0
        %385 = vmatprep.subr.mxu0 0.0
        %386 = vmatpush1.msra.mxu0 0.0
        %387 = vmatprep.subr.mxu0 0.0
        %388 = vmatpush1.msra.mxu0 0.0
        %389 = vmatprep.subr.mxu0 0.0
        %390 = vmatpush1.msra.mxu0 0.0
        %391 = vmatprep.subr.mxu0 0.0
        %392 = vmatpush1.msra.mxu0 0.0
        %393 = vmatprep.subr.mxu0 0.0
        %394 = vmatpush1.msra.mxu0 0.0
        %395 = vmatprep.subr.mxu0 0.0
        %396 = vmatpush1.msra.mxu0 0.0
        %397 = vmatprep.subr.mxu0 0.0
        %398 = vmatpush1.msra.mxu0 0.0
        %399 = vmatprep.subr.mxu0 0.0
        %400 = vmatpush1.msra.mxu0 0.0
        %401 = vmatprep.subr.mxu0 0.0
        %402 = vmatpush1.msra.mxu0 0.0
        %403 = vmatprep.subr.mxu0 0.0
        %404 = vmatpush1.msra.mxu0 0.0
        %405 = vmatprep.subr.mxu0 0.0
        %406 = vmatpush1.msra.mxu0 0.0
        %407 = vmatprep.subr.mxu0 0.0
        %408 = vmatpush1.msra.mxu0 0.0
        %409 = vmatprep.subr.mxu0 0.0
        %410 = vmatpush1.msra.mxu0 0.0
        %411 = vmatprep.subr.mxu0 0.0
        %412 = vmatpush1.msra.mxu0 0.0
        %413 = vmatprep.mubr.f32.mxu0 0.0
        %414 = vmatmul.mubr.f32.gmra.mrb[0].mxu0 %v326
        %v415 = vpop.f32.mrb[0].mxu0
        %v416 = vadd.f32 0.0, %v415
        %v417 = vpop.f32.mrb[0].mxu0
        %v418 = vadd.f32 0.0, %v417
        %419 = vmatprep.mubr.f32.mxu0 0.0
        %420 = vmatmul.mubr.f32.gmra.mrb[0].mxu0 %v329
        %v421 = vpop.f32.mrb[0].mxu0
        %v422 = vadd.f32 0.0, %v421
        %v423 = vpop.f32.mrb[0].mxu0
        %v424 = vadd.f32 0.0, %v423
        %425 = vmatprep.mubr.f32.mxu0 0.0
        %426 = vmatmul.mubr.f32.gmra.mrb[0].mxu0 %v332
        %v427 = vpop.f32.mrb[0].mxu0
        %v428 = vadd.f32 0.0, %v427
        %v429 = vpop.f32.mrb[0].mxu0
        %v430 = vadd.f32 0.0, %v429
        %431 = vmatprep.mubr.f32.mxu0 0.0
        %432 = vmatmul.mubr.f32.gmra.mrb[0].mxu0 %v335
        %v433 = vpop.f32.mrb[0].mxu0
        %v434 = vadd.f32 0.0, %v433
        %v435 = vpop.f32.mrb[0].mxu0
        %v436 = vadd.f32 0.0, %v435
        %437 = vmatprep.mubr.f32.mxu0 0.0
        %438 = vmatmul.mubr.f32.gmra.mrb[0].mxu0 %v338
        %v439 = vpop.f32.mrb[0].mxu0
        %v440 = vadd.f32 0.0, %v439
        %v441 = vpop.f32.mrb[0].mxu0
        %v442 = vadd.f32 0.0, %v441
        %443 = vmatprep.mubr.f32.mxu0 0.0
        %444 = vmatmul.mubr.f32.gmra.mrb[0].mxu0 %v341
        %v445 = vpop.f32.mrb[0].mxu0
        %v446 = vadd.f32 0.0, %v445
        %v447 = vpop.f32.mrb[0].mxu0
        %v448 = vadd.f32 0.0, %v447
        %449 = vmatprep.mubr.f32.mxu0 0.0
        %450 = vmatmul.mubr.f32.gmra.mrb[0].mxu0 %v344
        %v451 = vpop.f32.mrb[0].mxu0
        %v452 = vadd.f32 0.0, %v451
        %v453 = vpop.f32.mrb[0].mxu0
        %v454 = vadd.f32 0.0, %v453
        %455 = vmatprep.mubr.f32.mxu0 0.0
        %456 = vmatmul.mubr.f32.gmra.mrb[0].mxu0 %v347
        %v457 = vpop.f32.mrb[0].mxu0
        %v458 = vadd.f32 0.0, %v457
        %v459 = vpop.f32.mrb[0].mxu0
        %v460 = vadd.f32 0.0, %v459
        %461 = vdwg.mxu0
        %v462 = vmul.f32 %v416, %v320
        %v463 = vmul.f32 %v418, %v321
        %v464 = vmul.f32 %v428, %v320
        %v465 = vmul.f32 %v430, %v321
        %v466 = vmul.f32 %v440, %v320
        %v467 = vmul.f32 %v442, %v321
        %v468 = vmul.f32 %v452, %v320
        %v469 = vmul.f32 %v454, %v321
        %v470 = vrot.slane %v462, 4
        %v471 = vadd.f32 %v462, %v470
        %v472 = vrot.slane %v471, 2
        %v473 = vadd.f32 %v471, %v472
        %v474 = vrot.slane %v473, 1
        %v475 = vadd.f32 %v473, %v474
        %v476 = vrot.slane %v463, 4
        %v477 = vadd.f32 %v463, %v476
        %v478 = vrot.slane %v477, 2
        %v479 = vadd.f32 %v477, %v478
        %v480 = vrot.slane %v479, 1
        %v481 = vadd.f32 %v479, %v480
        %v482 = vrot.slane %v464, 4
        %v483 = vadd.f32 %v464, %v482
        %v484 = vrot.slane %v483, 2
        %v485 = vadd.f32 %v483, %v484
        %v486 = vrot.slane %v485, 1
        %v487 = vadd.f32 %v485, %v486
        %v488 = vrot.slane %v465, 4
        %v489 = vadd.f32 %v465, %v488
        %v490 = vrot.slane %v489, 2
        %v491 = vadd.f32 %v489, %v490
        %v492 = vrot.slane %v491, 1
        %v493 = vadd.f32 %v491, %v492
        %v494 = vrot.slane %v466, 4
        %v495 = vadd.f32 %v466, %v494
        %v496 = vrot.slane %v495, 2
        %v497 = vadd.f32 %v495, %v496
        %v498 = vrot.slane %v497, 1
        %v499 = vadd.f32 %v497, %v498
        %v500 = vrot.slane %v467, 4
        %v501 = vadd.f32 %v467, %v500
        %v502 = vrot.slane %v501, 2
        %v503 = vadd.f32 %v501, %v502
        %v504 = vrot.slane %v503, 1
        %v505 = vadd.f32 %v503, %v504
        %v506 = vrot.slane %v468, 4
        %v507 = vadd.f32 %v468, %v506
        %v508 = vrot.slane %v507, 2
        %v509 = vadd.f32 %v507, %v508
        %v510 = vrot.slane %v509, 1
        %v511 = vadd.f32 %v509, %v510
        %v512 = vrot.slane %v469, 4
        %v513 = vadd.f32 %v469, %v512
        %v514 = vrot.slane %v513, 2
        %v515 = vadd.f32 %v513, %v514
        %v516 = vrot.slane %v515, 1
        %v517 = vadd.f32 %v515, %v516
        %v518 = vadd.f32 %v475, 0.0
        %v519 = vadd.f32 %v481, 0.0
        %v520 = vadd.f32 %v487, 0.0
        %v521 = vadd.f32 %v493, 0.0
        %v522 = vadd.f32 %v499, 0.0
        %v523 = vadd.f32 %v505, 0.0
        %v524 = vadd.f32 %v511, 0.0
        %v525 = vadd.f32 %v517, 0.0
        %v526 = vmul.f32 %v422, %v322
        %v527 = vmul.f32 %v424, %v323
        %v528 = vmul.f32 %v434, %v322
        %v529 = vmul.f32 %v436, %v323
        %v530 = vmul.f32 %v446, %v322
        %v531 = vmul.f32 %v448, %v323
        %v532 = vmul.f32 %v458, %v322
        %v533 = vmul.f32 %v460, %v323
        %v534 = vrot.slane %v526, 4
        %v535 = vadd.f32 %v526, %v534
        %v536 = vrot.slane %v535, 2
        %v537 = vadd.f32 %v535, %v536
        %v538 = vrot.slane %v537, 1
        %v539 = vadd.f32 %v537, %v538
        %v540 = vrot.slane %v527, 4
        %v541 = vadd.f32 %v527, %v540
        %v542 = vrot.slane %v541, 2
        %v543 = vadd.f32 %v541, %v542
        %v544 = vrot.slane %v543, 1
        %v545 = vadd.f32 %v543, %v544
        %v546 = vrot.slane %v528, 4
        %v547 = vadd.f32 %v528, %v546
        %v548 = vrot.slane %v547, 2
        %v549 = vadd.f32 %v547, %v548
        %v550 = vrot.slane %v549, 1
        %v551 = vadd.f32 %v549, %v550
        %v552 = vrot.slane %v529, 4
        %v553 = vadd.f32 %v529, %v552
        %v554 = vrot.slane %v553, 2
        %v555 = vadd.f32 %v553, %v554
        %v556 = vrot.slane %v555, 1
        %v557 = vadd.f32 %v555, %v556
        %v558 = vrot.slane %v530, 4
        %v559 = vadd.f32 %v530, %v558
        %v560 = vrot.slane %v559, 2
        %v561 = vadd.f32 %v559, %v560
        %v562 = vrot.slane %v561, 1
        %v563 = vadd.f32 %v561, %v562
        %v564 = vrot.slane %v531, 4
        %v565 = vadd.f32 %v531, %v564
        %v566 = vrot.slane %v565, 2
        %v567 = vadd.f32 %v565, %v566
        %v568 = vrot.slane %v567, 1
        %v569 = vadd.f32 %v567, %v568
        %v570 = vrot.slane %v532, 4
        %v571 = vadd.f32 %v532, %v570
        %v572 = vrot.slane %v571, 2
        %v573 = vadd.f32 %v571, %v572
        %v574 = vrot.slane %v573, 1
        %v575 = vadd.f32 %v573, %v574
        %v576 = vrot.slane %v533, 4
        %v577 = vadd.f32 %v533, %v576
        %v578 = vrot.slane %v577, 2
        %v579 = vadd.f32 %v577, %v578
        %v580 = vrot.slane %v579, 1
        %v581 = vadd.f32 %v579, %v580
        %v582 = vadd.f32 %v518, %v539
        %v583 = vadd.f32 %v519, %v545
        %v584 = vadd.f32 %v520, %v551
        %v585 = vadd.f32 %v521, %v557
        %v586 = vadd.f32 %v522, %v563
        %v587 = vadd.f32 %v523, %v569
        %v588 = vadd.f32 %v524, %v575
        %v589 = vadd.f32 %v525, %v581
        %v598 = vcombine.low %v582, %v583
        %v599 = vcombine.low %v584, %v585
        %v600 = vcombine.low %v586, %v587
        %v601 = vcombine.low %v588, %v589
        %v602 = vrot.slane %v599, 7
        %vm603 = vcmask 1041409
        %v604 = vsel %vm603, %v602, %v598
        %vm605 = vcmask 1045509
        %v606 = vsel %vm605, %v602, %v604
        %v607 = vrot.slane %v600, 6
        %vm608 = vcmask 1042434
        %v609 = vsel %vm608, %v607, %v606
        %vm610 = vcmask 1046534
        %v611 = vsel %vm610, %v607, %v609
        %v612 = vrot.slane %v601, 5
        %vm613 = vcmask 1043459
        %v614 = vsel %vm613, %v612, %v611
        %vm615 = vcmask 1047559
        %v616 = vsel %vm615, %v612, %v614
        %618 = vst [vmem:[%s196] sm:$0xff] %v616
        %s619 = sand.u32 %s103, 1
        %s620 = scalar_lea.sflag [#allocation3], %s619
        %s621 = sand.u32 %s103, 1
        %s622 = smul.addr %s621, 8
        %s623 = scalar_lea.vmem [#allocation2], %s622
        // Predicated region
        $region29: #{tpu_custom_call.1} parent=27 // pred_check
          %p624 = pneg %p113
        $region30: #{tpu_custom_call.1} parent=27 // pred_check_branch
          %626 = sbr.rel (%p624) target = $region32
        $region31: #{tpu_custom_call.1} parent=27 // pred_region
          %s627 = smul.u32 2, %s23
          %s629 = ssub.s32 128, 128
          %630 = vsyncadd %s620, %s629
          %s631 = smul.addr %s22, 2
          %s632 = sadd.s32 %s627, %s631
          %s633 = smul.addr %s21, 2
          %s634 = sadd.s32 %s632, %s633
          %s635 = smul.addr %s634, 64
          %s636 = scalar_lea.hbm %s2, %s635
          %s638 = sshll.u32 %s623, 4
          %s639 = int_to_ptr.vmem [resolvable:$true] %s638
          %641 = dma.vmem_to_hbm [thread:$0]  %s639, 128, %s636, %s620
        $region32: #{tpu_custom_call.1} parent=27 // pred_fallthru
          _
      $region28: #{tpu_custom_call.1} parent=5 // pred_fallthru
        _
      %p642 = scmp.le.s32.totalorder 2, %s11
      // Predicated region
      $region33: #{tpu_custom_call.1} parent=5 // pred_check
        %p643 = pneg %p642
      $region34: #{tpu_custom_call.1} parent=5 // pred_check_branch
        %645 = sbr.rel (%p643) target = $region36
      $region35: #{tpu_custom_call.1} parent=5 // pred_region
        %s646 = ssub.s32 %s11, 2
        // Predicated region
        $region37: #{tpu_custom_call.1} parent=35 // pred_check
          %p647 = pneg %p119
        $region38: #{tpu_custom_call.1} parent=35 // pred_check_branch
          %649 = sbr.rel (%p647) target = $region40
        $region39: #{tpu_custom_call.1} parent=35 // pred_region
          %s650 = sand.u32 %s104, 1
          %s651 = scalar_lea.sflag [#allocation3], %s650
          %s652 = sand.u32 %s104, 1
          %s653 = smul.addr %s652, 8
          %s654 = scalar_lea.vmem [#allocation2], %s653
          %655 = dma.done %s651, 128
        $region40: #{tpu_custom_call.1} parent=35 // pred_fallthru
          _
      $region36: #{tpu_custom_call.1} parent=5 // pred_fallthru
        _
    $region6: #{tpu_custom_call.1} parent=1 // loop_footer
      %s15 = sadd.s32 1, %s11
    $region7: #{tpu_custom_call.1} parent=1 // loop_footer_branch
      %10 = sbr.rel target = $region3
    $region8: #{tpu_custom_call.1} parent=1 // loop_exit
      _
    %656 = vsyncpa [#allocation3], 1
    %s657 = scalar_lea.sflag [#allocation3], 1
    %658 = vsyncpa %s657, 1

</llo_original>
